<compile_context>
chip_gen: v5e
topology: v5e:2x2
jax: 0.10.0
libtpu: 0.0.40
codegen_flags: <defaults>
</compile_context>

<pallas_src>
import math

import jax
import jax.numpy as jnp
from jax.experimental import pallas as pl
from jax.experimental.pallas import tpu as pltpu


def _round_up(x, m):
    return ((x + m - 1) // m) * m


def _largest_divisor(n, max_t, mult):
    """Largest divisor of n that is a multiple of `mult` and <= max_t (or None)."""
    best = None
    t = mult
    limit = min(max_t, n)
    while t <= limit:
        if n % t == 0:
            best = t
        t += mult
    return best


def _choose_m_tiling(m, tm_max):
    """Pick (tm, m_pad).  Prefer tm | m (no pad) and >= 2 tiles (v7x megacore)."""
    if m % 8 == 0:
        if m >= 16:
            t = _largest_divisor(m, min(tm_max, m // 2), 8)
            if t is not None:
                return t, m                      # >= 2 tiles, no padding
        t = _largest_divisor(m, tm_max, 8)
        if t is not None:
            return t, m                          # single tile, no padding
    tm = min(tm_max, _round_up(m, 8))            # rare fallback: pad rows
    return tm, _round_up(m, tm)


# ----------------------------- Pallas kernels --------------------------------
def _proj_kernel_fused(a_ref, b_ref, bias_ref, o_ref):
    """Small-K path: one shot  o = A @ B + bias  (no K grid, no scratch)."""
    o_ref[...] = (
        jnp.dot(a_ref[...], b_ref[...], preferred_element_type=jnp.float32)
        + bias_ref[...]
    ).astype(o_ref.dtype)


def _proj_kernel_acc(a_ref, b_ref, bias_ref, o_ref, acc_ref):
    """Large-K path: K-tiled accumulator; weight streamed in (tk, tn) slabs."""
    k = pl.program_id(2)

    @pl.when(k == 0)
    def _():
        acc_ref[...] = jnp.broadcast_to(bias_ref[...], acc_ref.shape)

    acc_ref[...] += jnp.dot(a_ref[...], b_ref[...],
                            preferred_element_type=jnp.float32)

    @pl.when(k == pl.num_programs(2) - 1)
    def _():
        o_ref[...] = acc_ref[...].astype(o_ref.dtype)


# --------------------------- projection dispatcher ----------------------------
def _patch_projection(patches, weight_ke, bias2d, *, small_k_threshold=2048,
                      tn_max=512, tk_pref=512):
    """patches (M,K) bf16, weight_ke (K,E) bf16, bias2d (1,E) f32 -> (M,E) f32."""
    m, k_dim = patches.shape
    k_w, e = weight_ke.shape
    assert k_w == k_dim and bias2d.shape == (1, e)

    # Hardware-aware caps: 128 MiB VMEM (v5e/v6e) -> bigger M tiles; 64 MiB (v7x) -> 512.
    try:
        vmem_cap = int(getattr(pltpu.get_tpu_info(), "vmem_capacity_bytes",
                               64 * 2**20))
    except Exception:
        vmem_cap = 64 * 2**20
    tm_max = 1024 if vmem_cap >= 100 * 2**20 else 512

    # --- K tiling: never pad `patches` along K unless unavoidable.
    small_k = k_dim <= small_k_threshold
    if small_k:
        k_pad = k_dim if k_dim % 128 == 0 else _round_up(k_dim, 128)
        tk = k_pad
    else:
        tk = _largest_divisor(k_dim, 1024, 128)
        if tk is None:
            tk = tk_pref
            k_pad = _round_up(k_dim, tk)
        else:
            k_pad = k_dim

    # --- E tiling: write the output at its true width (no pad, no slice pass).
    # Tile E only when the resident (K, E) weight would pressure VMEM.
    if e % 128 == 0 and e > 512 and k_pad * e * 2 > 4 * 2**20:
        tn = _largest_divisor(e, tn_max, 128)
    else:
        tn = e

    # --- M tiling: divisor of M (no pad) and >= 2 tiles for v7x megacore.
    tm, m_pad = _choose_m_tiling(m, tm_max)

    pad_m, pad_k = m_pad - m, k_pad - k_dim
    if pad_m or pad_k:
        # Rare fallback: explicit zero fill so padded-K columns contribute 0.
        patches = jnp.pad(patches, ((0, pad_m), (0, pad_k)))
    if pad_k:
        weight_ke = jnp.pad(weight_ke, ((0, pad_k), (0, 0)))

    grid_m, grid_n = m_pad // tm, e // tn
    cost = pl.CostEstimate(
        flops=2 * m_pad * k_pad * e,
        transcendentals=0,
        bytes_accessed=(m_pad * k_pad * 2 + k_pad * e * 2
                        + m_pad * e * 4 + e * 4),
    )

    if small_k:
        vmem_need = (2 * tm * k_pad * 2 + 2 * k_pad * tn * 2
                     + 2 * tn * 4 + 2 * tm * tn * 4)
        out = pl.pallas_call(
            _proj_kernel_fused,
            out_shape=jax.ShapeDtypeStruct((m_pad, e), jnp.float32),
            grid_spec=pltpu.PrefetchScalarGridSpec(
                num_scalar_prefetch=0,
                grid=(grid_m, grid_n),
                in_specs=[
                    pl.BlockSpec((tm, k_pad), lambda i, j: (i, 0)),
                    pl.BlockSpec((k_pad, tn), lambda i, j: (0, j)),
                    pl.BlockSpec((1, tn), lambda i, j: (0, j)),
                ],
                out_specs=pl.BlockSpec((tm, tn), lambda i, j: (i, j)),
            ),
            compiler_params=pltpu.CompilerParams(
                dimension_semantics=("parallel", "parallel"),
                vmem_limit_bytes=int(min(max(2 * vmem_need, 32 * 2**20),
                                         100 * 2**20)),
            ),
            cost_estimate=cost,
        )(patches, weight_ke, bias2d)
    else:
        vmem_need = (2 * tm * tk * 2 + 2 * tk * tn * 2 + 2 * tn * 4
                     + 2 * tm * tn * 4 + tm * tn * 4)
        out = pl.pallas_call(
            _proj_kernel_acc,
            out_shape=jax.ShapeDtypeStruct((m_pad, e), jnp.float32),
            grid_spec=pltpu.PrefetchScalarGridSpec(
                num_scalar_prefetch=0,
                grid=(grid_m, grid_n, k_pad // tk),
                in_specs=[
                    pl.BlockSpec((tm, tk), lambda i, j, k: (i, k)),
                    pl.BlockSpec((tk, tn), lambda i, j, k: (k, j)),  # streamed slabs
                    pl.BlockSpec((1, tn), lambda i, j, k: (0, j)),
                ],
                out_specs=pl.BlockSpec((tm, tn), lambda i, j, k: (i, j)),
                scratch_shapes=[pltpu.VMEM((tm, tn), jnp.float32)],
            ),
            compiler_params=pltpu.CompilerParams(
                dimension_semantics=("parallel", "parallel", "arbitrary"),
                vmem_limit_bytes=int(min(max(2 * vmem_need, 32 * 2**20),
                                         100 * 2**20)),
            ),
            cost_estimate=cost,
        )(patches, weight_ke, bias2d)

    return out if m_pad == m else out[:m]


# ----------------------------- Module wrapper --------------------------------
class PatchEmbedding3DPallas:
    """JAX/Pallas equivalent of the PyTorch PatchEmbedding3D (norm = Identity)."""

    def __init__(self, tensor_dhw=(8, 16, 16), patch_size=(2, 8, 8),
                 stride=(2, 8, 8), in_channels=4, embed_dim=32, flatten=True):
        assert tuple(patch_size) == tuple(stride), \
            "kernel implemented for the non-overlapping case (stride == patch_size)"
        # TODO(synk): stride != patch_size (overlapping conv) needs an im2col gather.
        self.tensor_dhw = tensor_dhw
        self.patch_size = patch_size
        self.stride = stride
        self.in_channels = in_channels
        self.embed_dim = embed_dim
        self.flatten = flatten
        self.grid_size = tuple(
            (tensor_dhw[i] - patch_size[i]) // stride[i] + 1 for i in range(3))
        self.num_patches = self.grid_size[0] * self.grid_size[1] * self.grid_size[2]

        # Deterministic init matching nn.Conv3d defaults:
        # kaiming_uniform_(a=sqrt(5)) -> bound = 1/sqrt(fan_in); bias uniform(+-bound).
        kd, kh, kw = patch_size
        fan_in = in_channels * kd * kh * kw
        wkey, bkey = jax.random.split(jax.random.PRNGKey(0))
        bound = 1.0 / math.sqrt(fan_in)
        # PyTorch Conv3d layout (E, C, kd, kh, kw); f32 master copy.
        self.weight = jax.random.uniform(
            wkey, (embed_dim, in_channels, kd, kh, kw),
            minval=-bound, maxval=bound, dtype=jnp.float32)
        self.bias = jax.random.uniform(
            bkey, (embed_dim,), minval=-bound, maxval=bound, dtype=jnp.float32)

        # Precompute matmul operands once (avoids a per-call transpose/cast):
        # (E, C, kd, kh, kw) -> (K, E) bf16 MXU operand; bias as f32 (1, E).
        k_total = in_channels * kd * kh * kw
        self.w_ke = self.weight.reshape(embed_dim, k_total).T.astype(jnp.bfloat16)
        self.bias2d = self.bias.reshape(1, embed_dim).astype(jnp.float32)

    def __call__(self, x):
        """x: (N, C, D, H, W) f32 -> (N, num_patches, E) f32 (when flatten=True)."""
        n, c, d, h, w = x.shape
        gd, gh, gw = self.grid_size
        pd, ph, pw = self.patch_size
        e = self.embed_dim
        k_total = c * pd * ph * pw
        m = n * gd * gh * gw

        # Cast to bf16 BEFORE the patchify relayout to halve its HBM traffic;
        # the MXU accumulates in f32 inside the kernel.
        # NOTE: bf16 operands deviate from PyTorch's f32 Conv3d at ~bf16 level.
        xc = x.astype(jnp.bfloat16)

        # ---- glue: non-overlapping patch extraction (pure layout ops) ----
        # TODO(synk): fuse this relayout into the Pallas kernel (HBM-resident x,
        # per-(n, gd, gh) slab DMA + in-VMEM regroup) to drop the extra
        # read+write of the activation the XLA transpose costs.
        xp = xc.reshape(n, c, gd, pd, gh, ph, gw, pw)
        xp = xp.transpose(0, 2, 4, 6, 1, 3, 5, 7)   # (N, gd, gh, gw, C, pd, ph, pw)
        patches = xp.reshape(m, k_total)

        # ---- Pallas MXU projection + bias (f32 output) ----
        out = _patch_projection(patches, self.w_ke, self.bias2d)

        out = out.reshape(n, gd, gh, gw, e)
        if self.flatten:
            out = out.reshape(n, self.num_patches, e)
        # norm = Identity
        return out


# ----------------------------- demo / check ----------------------------------
if __name__ == "__main__":
    n_batch, c_in = 2, 4
    tensor_dhw = (8, 16, 16)
    patch_size = (2, 8, 8)
    embed_dim = 32

    mod = PatchEmbedding3DPallas(tensor_dhw=tensor_dhw, patch_size=patch_size,
                                 stride=patch_size, in_channels=c_in,
                                 embed_dim=embed_dim)

    key = jax.random.PRNGKey(0)
    x = jax.random.normal(key, (n_batch, c_in) + tensor_dhw, dtype=jnp.float32)

    out = jax.block_until_ready(mod(x))
    assert out.shape == (n_batch, mod.num_patches, embed_dim), out.shape

    # Reference with the same bf16-cast operands and f32 accumulation
    # (matches the kernel's precision pipeline).
    gd, gh, gw = mod.grid_size
    pd, ph, pw = patch_size
    xp = x.astype(jnp.bfloat16).reshape(
        n_batch, c_in, gd, pd, gh, ph, gw, pw).transpose(0, 2, 4, 6, 1, 3, 5, 7)
    patches = xp.reshape(n_batch * gd * gh * gw,
                         c_in * pd * ph * pw).astype(jnp.float32)
    w = mod.weight.reshape(embed_dim, -1).astype(jnp.bfloat16).astype(jnp.float32)
    ref = (patches @ w.T + mod.bias).reshape(n_batch, mod.num_patches, embed_dim)
    err = float(jnp.max(jnp.abs(out - ref)))
    assert jnp.allclose(out, ref, atol=2e-3, rtol=2e-3), err

    print("KERNEL_OK")
</pallas_src>

<mosaic_0001>
module attributes {stable_mosaic.version = 11 : i64} {
  func.func @_proj_kernel_fused(%arg0: i32, %arg1: i32, %arg2: memref<16x512xbf16, #tpu.memory_space<vmem>>, %arg3: memref<512x32xbf16, #tpu.memory_space<vmem>>, %arg4: memref<1x32xf32, #tpu.memory_space<vmem>>, %arg5: memref<16x32xf32, #tpu.memory_space<vmem>>) attributes {dimension_semantics = [#tpu.dimension_semantics<parallel>, #tpu.dimension_semantics<parallel>], iteration_bounds = array<i64: 2, 1>, scalar_prefetch = 0 : i64, scratch_operands = 0 : i64, tpu.core_type = #tpu.core_type<tc>, window_params = [{transform_indices = @transform_0, window_bounds = array<i64: 16, 512>}, {transform_indices = @transform_1, window_bounds = array<i64: 512, 32>}, {transform_indices = @transform_2, window_bounds = array<i64: 1, 32>}, {transform_indices = @transform_3, window_bounds = array<i64: 16, 32>}]} {
    %c0 = arith.constant 0 : index
    %c0_0 = arith.constant 0 : index
    %0 = vector.load %arg2[%c0, %c0_0] : memref<16x512xbf16, #tpu.memory_space<vmem>>, vector<16x512xbf16>
    %c0_1 = arith.constant 0 : index
    %c0_2 = arith.constant 0 : index
    %1 = vector.load %arg3[%c0_1, %c0_2] : memref<512x32xbf16, #tpu.memory_space<vmem>>, vector<512x32xbf16>
    %cst = arith.constant dense<0.000000e+00> : vector<16x32xf32>
    %2 = tpu.matmul %0, %1, %cst {dimension_numbers = #tpu.dot_dimension_numbers<[1], [0], [0], [1], [0, 0, 1, 1], [], []>} : vector<16x512xbf16>, vector<512x32xbf16>, vector<16x32xf32> -> vector<16x32xf32>
    %c0_3 = arith.constant 0 : index
    %c0_4 = arith.constant 0 : index
    %3 = vector.load %arg4[%c0_3, %c0_4] : memref<1x32xf32, #tpu.memory_space<vmem>>, vector<1x32xf32>
    %4 = vector.broadcast %3 : vector<1x32xf32> to vector<16x32xf32>
    %5 = arith.addf %2, %4 : vector<16x32xf32>
    %c0_5 = arith.constant 0 : index
    %c0_6 = arith.constant 0 : index
    %6 = vector.load %arg5[%c0_5, %c0_6] : memref<16x32xf32, #tpu.memory_space<vmem>>, vector<16x32xf32>
    tpu.vector_store %arg5[%c0_5, %c0_6], %5 {strides = array<i32>} : memref<16x32xf32, #tpu.memory_space<vmem>>, vector<16x32xf32>,
    return
  }
  func.func @transform_0(%arg0: i32, %arg1: i32) -> (i32, i32) {
    %c0_i32 = arith.constant 0 : i32
    %c0_i32_0 = arith.constant 0 : i32
    return %arg0, %c0_i32 : i32, i32
  }
  func.func @transform_1(%arg0: i32, %arg1: i32) -> (i32, i32) {
    %c0_i32 = arith.constant 0 : i32
    %c0_i32_0 = arith.constant 0 : i32
    return %c0_i32, %arg1 : i32, i32
  }
  func.func @transform_2(%arg0: i32, %arg1: i32) -> (i32, i32) {
    %c0_i32 = arith.constant 0 : i32
    %c0_i32_0 = arith.constant 0 : i32
    return %c0_i32, %arg1 : i32, i32
  }
  func.func @transform_3(%arg0: i32, %arg1: i32) -> (i32, i32) {
    %c0_i32 = arith.constant 0 : i32
    return %arg0, %arg1 : i32, i32
  }
}

</mosaic_0001>

<llo_original>
// kernel: tpu_custom_call.1
$region0: #{tpu_custom_call.1}
  #allocation0 [shape = 'u32[]', space=smem, size = 0x4, offset = 0x4, fixed_abs, tag = 'smem constant byte address 0x4 - core index']
  #allocation1 [shape = 'u32[72,128]{1,0:T(1,128)}', space=vmem, size = 0x9000, scoped, tag = 'internal scratch']
  %s0 = inlined_call_operand.vmem [shape: bf16[32,512], index: 0, kind: input, shape index: {}]
  %s1 = inlined_call_operand.vmem [shape: bf16[512,32], index: 1, kind: input, shape index: {}]
  %s2 = inlined_call_operand.vmem [shape: f32[1,32], index: 2, kind: input, shape index: {}]
  %s3 = inlined_call_operand.hbm [shape: f32[32,32], index: 3, kind: output, shape index: {}]
  %s4 = sld [smem:[#allocation0]]
  $region45: #{tpu_custom_call.1} parent=0
    _
  %s6 = ssub.s32 1, %s4
  %s7 = scalar_select 0, %s6, %s4
  $region1: #{tpu_custom_call.1} parent=0
    #allocation2 [shape = 'u8[16384]{0}', space=vmem, size = 0x4000, scoped, tag = 'output window, operand 0']
    #allocation3 [shape = 's32[2]{0}', space=sflag, size = 0x8, scoped, tag = 'scoped memory for tpu_custom_call.1']
    %8 = vsyncpa [#allocation3], 0
    %s9 = scalar_lea.sflag [#allocation3], 1
    %10 = vsyncpa %s9, 0
    loop: start=0, step=1, limit=4
    $region2: #{tpu_custom_call.1} parent=1 // loop_pre_header
      _
    $region3: #{tpu_custom_call.1} parent=1 // loop_header
      %s12 = sphi 0, %s16
      %p13 = scmp.ge.s32.totalorder %s12, 4
      %s19 = sphi 0, %s31
      %s20 = sphi 0, %s27
      %s21 = sphi 0, %s19
      %s22 = sphi 0, %s20
      %s23 = sphi 0, %s21
      %s24 = sphi 0, %s22
      %s34 = sphi 0, %s36
      %s37 = sphi 0, %s34
      %s38 = sphi 0, %s37
      %s54 = sphi 0, %s38
      %s60 = sphi 0, %s62
      %s63 = sphi 0, %s60
      %s64 = sphi 0, %s63
      %s80 = sphi 0, %s64
      %s86 = sphi 0, %s88
      %s89 = sphi 0, %s86
      %s90 = sphi 0, %s89
      %s106 = sphi 0, %s90
      %s114 = sphi 0, %s116
      %s117 = sphi 0, %s114
      %s118 = sphi 0, %s117
      %s134 = sphi 0, %s118
    $region4: #{tpu_custom_call.1} parent=1 // loop_header_branch
      %15 = sbr.rel (%p13) target = $region8
    $region5: #{tpu_custom_call.1} parent=1 // loop_body
      %s17 = ssub.s32 %s12, 1
      %s18 = ssub.s32 %s12, 2
      %s25 = sadd.s32 1, %s20
      %p26 = scmp.ge.s32.totalorder %s25, 1
      %s27 = scalar_select %p26, 0, %s25
      %s28 = sadd.s32 1, %s19
      %s29 = scalar_select %p26, %s28, %s19
      %p30 = scmp.ge.s32.totalorder %s29, 2
      %s31 = scalar_select %p30, 0, %s29
      %s32 = ssub.s32 %s19, %s31
      %p33 = scmp.eq.s32.totalorder %s32, 0
      %s35 = sadd.s32 %s34, 1
      %s36 = scalar_select %p33, %s34, %s35
      %p39 = pneg %p33
      %p40 = scmp.eq.s32.totalorder %s12, 1
      %p41 = por %p39, %p40
      %p42 = scmp.ne.s32.totalorder %s34, %s37
      %p43 = scmp.eq.s32.totalorder %s12, 0
      %p44 = por %p42, %p43
      %p45 = scmp.ne.s32.totalorder %s34, %s37
      %p46 = scmp.eq.s32.totalorder %s17, 1
      %p47 = por %p45, %p46
      %p48 = scmp.ne.s32.totalorder %s37, %s38
      %p49 = scmp.eq.s32.totalorder %s17, 0
      %p50 = por %p48, %p49
      %p51 = scmp.ne.s32.totalorder %s37, %s38
      %p52 = scmp.eq.s32.totalorder %s18, 1
      %p53 = por %p51, %p52
      %p55 = scmp.ne.s32.totalorder %s38, %s54
      %p56 = scmp.eq.s32.totalorder %s18, 0
      %p57 = por %p55, %p56
      %s58 = ssub.s32 %s20, %s27
      %p59 = scmp.eq.s32.totalorder %s58, 0
      %s61 = sadd.s32 %s60, 1
      %s62 = scalar_select %p59, %s60, %s61
      %p65 = pneg %p59
      %p66 = scmp.eq.s32.totalorder %s12, 1
      %p67 = por %p65, %p66
      %p68 = scmp.ne.s32.totalorder %s60, %s63
      %p69 = scmp.eq.s32.totalorder %s12, 0
      %p70 = por %p68, %p69
      %p71 = scmp.ne.s32.totalorder %s60, %s63
      %p72 = scmp.eq.s32.totalorder %s17, 1
      %p73 = por %p71, %p72
      %p74 = scmp.ne.s32.totalorder %s63, %s64
      %p75 = scmp.eq.s32.totalorder %s17, 0
      %p76 = por %p74, %p75
      %p77 = scmp.ne.s32.totalorder %s63, %s64
      %p78 = scmp.eq.s32.totalorder %s18, 1
      %p79 = por %p77, %p78
      %p81 = scmp.ne.s32.totalorder %s64, %s80
      %p82 = scmp.eq.s32.totalorder %s18, 0
      %p83 = por %p81, %p82
      %s84 = ssub.s32 %s20, %s27
      %p85 = scmp.eq.s32.totalorder %s84, 0
      %s87 = sadd.s32 %s86, 1
      %s88 = scalar_select %p85, %s86, %s87
      %p91 = pneg %p85
      %p92 = scmp.eq.s32.totalorder %s12, 1
      %p93 = por %p91, %p92
      %p94 = scmp.ne.s32.totalorder %s86, %s89
      %p95 = scmp.eq.s32.totalorder %s12, 0
      %p96 = por %p94, %p95
      %p97 = scmp.ne.s32.totalorder %s86, %s89
      %p98 = scmp.eq.s32.totalorder %s17, 1
      %p99 = por %p97, %p98
      %p100 = scmp.ne.s32.totalorder %s89, %s90
      %p101 = scmp.eq.s32.totalorder %s17, 0
      %p102 = por %p100, %p101
      %p103 = scmp.ne.s32.totalorder %s89, %s90
      %p104 = scmp.eq.s32.totalorder %s18, 1
      %p105 = por %p103, %p104
      %p107 = scmp.ne.s32.totalorder %s90, %s106
      %p108 = scmp.eq.s32.totalorder %s18, 0
      %p109 = por %p107, %p108
      %s110 = ssub.s32 %s19, %s31
      %s111 = ssub.s32 %s20, %s27
      %s112 = sor.u32 %s110, %s111
      %p113 = scmp.eq.s32.totalorder %s112, 0
      %s115 = sadd.s32 %s114, 1
      %s116 = scalar_select %p113, %s114, %s115
      %p119 = pneg %p113
      %p120 = scmp.eq.s32.totalorder %s12, 1
      %p121 = por %p119, %p120
      %p122 = scmp.ne.s32.totalorder %s114, %s117
      %p123 = scmp.eq.s32.totalorder %s12, 0
      %p124 = por %p122, %p123
      %p125 = scmp.ne.s32.totalorder %s114, %s117
      %p126 = scmp.eq.s32.totalorder %s17, 1
      %p127 = por %p125, %p126
      %p128 = scmp.ne.s32.totalorder %s117, %s118
      %p129 = scmp.eq.s32.totalorder %s17, 0
      %p130 = por %p128, %p129
      %p131 = scmp.ne.s32.totalorder %s117, %s118
      %p132 = scmp.eq.s32.totalorder %s18, 1
      %p133 = por %p131, %p132
      %p135 = scmp.ne.s32.totalorder %s118, %s134
      %p136 = scmp.eq.s32.totalorder %s18, 0
      %p137 = por %p135, %p136
      %p138 = scmp.le.s32.totalorder 1, %s12
      %p139 = scmp.lt.s32.totalorder %s12, 3
      %p140 = pnand %p138, %p139
      %p141 = pneg %p140
      // Predicated region
      $region9: #{tpu_custom_call.1} parent=5 // pred_check
        _
      $region10: #{tpu_custom_call.1} parent=5 // pred_check_branch
        %143 = sbr.rel (%p140) target = $region12
      $region11: #{tpu_custom_call.1} parent=5 // pred_region
        %s144 = ssub.s32 %s12, 1
        // Predicated region
        $region13: #{tpu_custom_call.1} parent=11 // pred_check
          %p145 = pneg %p76
        $region14: #{tpu_custom_call.1} parent=11 // pred_check_branch
          %147 = sbr.rel (%p145) target = $region16
        $region15: #{tpu_custom_call.1} parent=11 // pred_region
          %p148 = scmp.lt.s32.totalorder %s22, 0
          %s149 = scalar_select %p148, %s22, 0
          %s150 = smul.addr %s149, 4
          %s151 = scalar_lea.vmem %s1, %s150
        $region16: #{tpu_custom_call.1} parent=11 // pred_fallthru
          _
        // Predicated region
        $region17: #{tpu_custom_call.1} parent=11 // pred_check
          %p152 = pneg %p102
        $region18: #{tpu_custom_call.1} parent=11 // pred_check_branch
          %154 = sbr.rel (%p152) target = $region20
        $region19: #{tpu_custom_call.1} parent=11 // pred_region
          %p155 = scmp.lt.s32.totalorder %s22, 0
          %s156 = scalar_select %p155, %s22, 0
          %s157 = scalar_lea.vmem %s2, %s156
        $region20: #{tpu_custom_call.1} parent=11 // pred_fallthru
          _
      $region12: #{tpu_custom_call.1} parent=5 // pred_fallthru
        _
      %p158 = scmp.lt.s32.totalorder %s12, 2
      // Predicated region
      $region21: #{tpu_custom_call.1} parent=5 // pred_check
        %p159 = pneg %p158
      $region22: #{tpu_custom_call.1} parent=5 // pred_check_branch
        %161 = sbr.rel (%p159) target = $region24
      $region23: #{tpu_custom_call.1} parent=5 // pred_region
        // Predicated region
        $region25: #{tpu_custom_call.1} parent=23 // pred_check
          %p162 = pneg %p44
        $region26: #{tpu_custom_call.1} parent=23 // pred_check_branch
          %164 = sbr.rel (%p162) target = $region28
        $region27: #{tpu_custom_call.1} parent=23 // pred_region
          %s165 = smul.u32 2, %s19
          %p166 = scmp.lt.s32.totalorder %s165, 3
          %s167 = scalar_select %p166, %s165, 3
          %s168 = smul.addr %s167, 4
          %s169 = smul.addr %s168, 4
          %s170 = scalar_lea.vmem %s0, %s169
          %s171 = smul.u32 2, %s19
        $region28: #{tpu_custom_call.1} parent=23 // pred_fallthru
          _
      $region24: #{tpu_custom_call.1} parent=5 // pred_fallthru
        _
      %p172 = scmp.le.s32.totalorder 1, %s12
      %p173 = scmp.lt.s32.totalorder %s12, 3
      %p174 = pnand %p172, %p173
      %p175 = pneg %p174
      // Predicated region
      $region29: #{tpu_custom_call.1} parent=5 // pred_check
        _
      $region30: #{tpu_custom_call.1} parent=5 // pred_check_branch
        %177 = sbr.rel (%p174) target = $region32
      $region31: #{tpu_custom_call.1} parent=5 // pred_region
        %s178 = ssub.s32 %s12, 1
        %s179 = smul.u32 2, %s21
        %p180 = scmp.lt.s32.totalorder %s179, 3
        %s181 = scalar_select %p180, %s179, 3
        %s182 = smul.addr %s181, 4
        %s183 = smul.addr %s182, 4
        %s184 = scalar_lea.vmem %s0, %s183
        %p185 = pneg %p50
        %p186 = pneg %p47
        %p187 = scmp.lt.s32.totalorder %s22, 0
        %s188 = scalar_select %p187, %s22, 0
        %s189 = smul.addr %s188, 4
        %s190 = scalar_lea.vmem %s1, %s189
        %p191 = pneg %p76
        %p192 = pneg %p73
        %p193 = scmp.lt.s32.totalorder %s22, 0
        %s194 = scalar_select %p193, %s22, 0
        %s195 = scalar_lea.vmem %s2, %s194
        %p196 = pneg %p102
        %p197 = pneg %p99
        %p198 = pneg %p130
        %p199 = pneg %p127
        %s200 = sand.u32 %s117, 1
        %s201 = scalar_lea.sflag [#allocation3], %s200
        %s202 = sand.u32 %s117, 1
        %s203 = smul.addr %s202, 16
        %s204 = scalar_lea.vmem [#allocation2], %s203
        %s205 = smul.u32 2, %s21
        %p206 = scmp.lt.s32.totalorder %s205, 3
        %s207 = scalar_select %p206, %s205, 3
        %s208 = smul.addr %s207, 4
        %s209 = smul.addr %s208, 4
        %s210 = scalar_lea.vmem %s0, %s209
        %s211 = smul.u32 2, %s21
        %p212 = scmp.lt.s32.totalorder %s22, 0
        %s213 = scalar_select %p212, %s22, 0
        %s214 = smul.addr %s213, 4
        %s215 = scalar_lea.vmem %s1, %s214
        %p216 = scmp.lt.s32.totalorder %s22, 0
        %s217 = scalar_select %p216, %s22, 0
        %s218 = scalar_lea.vmem %s2, %s217
        %s219 = smul.u32 2, %s21
        %v220 = vld [vmem:[%s210] sm:$0xff]
        %v221 = vld [vmem:[%s210 + $0x8] sm:$0xff]
        %v222 = vld [vmem:[%s210 + $0x10] sm:$0xff]
        %v223 = vld [vmem:[%s210 + $0x18] sm:$0xff]
        %v224 = vld [vmem:[%s215] sm:$0xf]
        %v225 = vld [vmem:[%s215 + $0x4] sm:$0xf]
        %v226 = vld [vmem:[%s215 + $0x8] sm:$0xf]
        %v227 = vld [vmem:[%s215 + $0xc] sm:$0xf]
        %v228 = vld [vmem:[%s215 + $0x10] sm:$0xf]
        %v229 = vld [vmem:[%s215 + $0x14] sm:$0xf]
        %v230 = vld [vmem:[%s215 + $0x18] sm:$0xf]
        %v231 = vld [vmem:[%s215 + $0x1c] sm:$0xf]
        %v232 = vld [vmem:[%s215 + $0x20] sm:$0xf]
        %v233 = vld [vmem:[%s215 + $0x24] sm:$0xf]
        %v234 = vld [vmem:[%s215 + $0x28] sm:$0xf]
        %v235 = vld [vmem:[%s215 + $0x2c] sm:$0xf]
        %v236 = vld [vmem:[%s215 + $0x30] sm:$0xf]
        %v237 = vld [vmem:[%s215 + $0x34] sm:$0xf]
        %v238 = vld [vmem:[%s215 + $0x38] sm:$0xf]
        %v239 = vld [vmem:[%s215 + $0x3c] sm:$0xf]
        %v240 = vld [vmem:[%s215 + $0x40] sm:$0xf]
        %v241 = vld [vmem:[%s215 + $0x44] sm:$0xf]
        %v242 = vld [vmem:[%s215 + $0x48] sm:$0xf]
        %v243 = vld [vmem:[%s215 + $0x4c] sm:$0xf]
        %v244 = vld [vmem:[%s215 + $0x50] sm:$0xf]
        %v245 = vld [vmem:[%s215 + $0x54] sm:$0xf]
        %v246 = vld [vmem:[%s215 + $0x58] sm:$0xf]
        %v247 = vld [vmem:[%s215 + $0x5c] sm:$0xf]
        %v248 = vld [vmem:[%s215 + $0x60] sm:$0xf]
        %v249 = vld [vmem:[%s215 + $0x64] sm:$0xf]
        %v250 = vld [vmem:[%s215 + $0x68] sm:$0xf]
        %v251 = vld [vmem:[%s215 + $0x6c] sm:$0xf]
        %v252 = vld [vmem:[%s215 + $0x70] sm:$0xf]
        %v253 = vld [vmem:[%s215 + $0x74] sm:$0xf]
        %v254 = vld [vmem:[%s215 + $0x78] sm:$0xf]
        %v255 = vld [vmem:[%s215 + $0x7c] sm:$0xf]
        %v256 = vld [vmem:[%s215 + $0x80] sm:$0xf]
        %v257 = vld [vmem:[%s215 + $0x84] sm:$0xf]
        %v258 = vld [vmem:[%s215 + $0x88] sm:$0xf]
        %v259 = vld [vmem:[%s215 + $0x8c] sm:$0xf]
        %v260 = vld [vmem:[%s215 + $0x90] sm:$0xf]
        %v261 = vld [vmem:[%s215 + $0x94] sm:$0xf]
        %v262 = vld [vmem:[%s215 + $0x98] sm:$0xf]
        %v263 = vld [vmem:[%s215 + $0x9c] sm:$0xf]
        %v264 = vld [vmem:[%s215 + $0xa0] sm:$0xf]
        %v265 = vld [vmem:[%s215 + $0xa4] sm:$0xf]
        %v266 = vld [vmem:[%s215 + $0xa8] sm:$0xf]
        %v267 = vld [vmem:[%s215 + $0xac] sm:$0xf]
        %v268 = vld [vmem:[%s215 + $0xb0] sm:$0xf]
        %v269 = vld [vmem:[%s215 + $0xb4] sm:$0xf]
        %v270 = vld [vmem:[%s215 + $0xb8] sm:$0xf]
        %v271 = vld [vmem:[%s215 + $0xbc] sm:$0xf]
        %v272 = vld [vmem:[%s215 + $0xc0] sm:$0xf]
        %v273 = vld [vmem:[%s215 + $0xc4] sm:$0xf]
        %v274 = vld [vmem:[%s215 + $0xc8] sm:$0xf]
        %v275 = vld [vmem:[%s215 + $0xcc] sm:$0xf]
        %v276 = vld [vmem:[%s215 + $0xd0] sm:$0xf]
        %v277 = vld [vmem:[%s215 + $0xd4] sm:$0xf]
        %v278 = vld [vmem:[%s215 + $0xd8] sm:$0xf]
        %v279 = vld [vmem:[%s215 + $0xdc] sm:$0xf]
        %v280 = vld [vmem:[%s215 + $0xe0] sm:$0xf]
        %v281 = vld [vmem:[%s215 + $0xe4] sm:$0xf]
        %v282 = vld [vmem:[%s215 + $0xe8] sm:$0xf]
        %v283 = vld [vmem:[%s215 + $0xec] sm:$0xf]
        %v284 = vld [vmem:[%s215 + $0xf0] sm:$0xf]
        %v285 = vld [vmem:[%s215 + $0xf4] sm:$0xf]
        %v286 = vld [vmem:[%s215 + $0xf8] sm:$0xf]
        %v287 = vld [vmem:[%s215 + $0xfc] sm:$0xf]
        %v288 = vld [vmem:[%s218] sm:$0x1]
        %v290 = vperm.slane %v288, 0
        %v296 = vunpack.c.l.b16 %v220
        %v297 = vunpack.c.h.b16 %v220
        %v298 = vunpack.c.l.b16 %v221
        %v299 = vunpack.c.h.b16 %v221
        %v300 = vunpack.c.l.b16 %v222
        %v301 = vunpack.c.h.b16 %v222
        %v302 = vunpack.c.l.b16 %v223
        %v303 = vunpack.c.h.b16 %v223
        %v304 = vpack.c.b16 %v300, %v296
        %v305 = vpack.c.b16 %v301, %v297
        %v306 = vpack.c.b16 %v302, %v298
        %v307 = vpack.c.b16 %v303, %v299
        %v376 = vunpack.c.l.b16 %v224
        %v377 = vunpack.c.l.b16 %v225
        %v378 = vunpack.c.l.b16 %v226
        %v379 = vunpack.c.l.b16 %v227
        %v380 = vunpack.c.l.b16 %v228
        %v381 = vunpack.c.l.b16 %v229
        %v382 = vunpack.c.l.b16 %v230
        %v383 = vunpack.c.l.b16 %v231
        %v384 = vunpack.c.l.b16 %v232
        %v385 = vunpack.c.l.b16 %v233
        %v386 = vunpack.c.l.b16 %v234
        %v387 = vunpack.c.l.b16 %v235
        %v388 = vunpack.c.l.b16 %v236
        %v389 = vunpack.c.l.b16 %v237
        %v390 = vunpack.c.l.b16 %v238
        %v391 = vunpack.c.l.b16 %v239
        %v392 = vunpack.c.l.b16 %v240
        %v393 = vunpack.c.l.b16 %v241
        %v394 = vunpack.c.l.b16 %v242
        %v395 = vunpack.c.l.b16 %v243
        %v396 = vunpack.c.l.b16 %v244
        %v397 = vunpack.c.l.b16 %v245
        %v398 = vunpack.c.l.b16 %v246
        %v399 = vunpack.c.l.b16 %v247
        %v400 = vunpack.c.l.b16 %v248
        %v401 = vunpack.c.l.b16 %v249
        %v402 = vunpack.c.l.b16 %v250
        %v403 = vunpack.c.l.b16 %v251
        %v404 = vunpack.c.l.b16 %v252
        %v405 = vunpack.c.l.b16 %v253
        %v406 = vunpack.c.l.b16 %v254
        %v407 = vunpack.c.l.b16 %v255
        %v408 = vunpack.c.l.b16 %v256
        %v409 = vunpack.c.l.b16 %v257
        %v410 = vunpack.c.l.b16 %v258
        %v411 = vunpack.c.l.b16 %v259
        %v412 = vunpack.c.l.b16 %v260
        %v413 = vunpack.c.l.b16 %v261
        %v414 = vunpack.c.l.b16 %v262
        %v415 = vunpack.c.l.b16 %v263
        %v416 = vunpack.c.l.b16 %v264
        %v417 = vunpack.c.l.b16 %v265
        %v418 = vunpack.c.l.b16 %v266
        %v419 = vunpack.c.l.b16 %v267
        %v420 = vunpack.c.l.b16 %v268
        %v421 = vunpack.c.l.b16 %v269
        %v422 = vunpack.c.l.b16 %v270
        %v423 = vunpack.c.l.b16 %v271
        %v424 = vunpack.c.l.b16 %v272
        %v425 = vunpack.c.l.b16 %v273
        %v426 = vunpack.c.l.b16 %v274
        %v427 = vunpack.c.l.b16 %v275
        %v428 = vunpack.c.l.b16 %v276
        %v429 = vunpack.c.l.b16 %v277
        %v430 = vunpack.c.l.b16 %v278
        %v431 = vunpack.c.l.b16 %v279
        %v432 = vunpack.c.l.b16 %v280
        %v433 = vunpack.c.l.b16 %v281
        %v434 = vunpack.c.l.b16 %v282
        %v435 = vunpack.c.l.b16 %v283
        %v436 = vunpack.c.l.b16 %v284
        %v437 = vunpack.c.l.b16 %v285
        %v438 = vunpack.c.l.b16 %v286
        %v439 = vunpack.c.l.b16 %v287
        %v440 = vpack.c.b16 %v377, %v376
        %v441 = vpack.c.b16 %v379, %v378
        %v442 = vpack.c.b16 %v381, %v380
        %v443 = vpack.c.b16 %v383, %v382
        %v444 = vpack.c.b16 %v385, %v384
        %v445 = vpack.c.b16 %v387, %v386
        %v446 = vpack.c.b16 %v389, %v388
        %v447 = vpack.c.b16 %v391, %v390
        %v448 = vpack.c.b16 %v393, %v392
        %v449 = vpack.c.b16 %v395, %v394
        %v450 = vpack.c.b16 %v397, %v396
        %v451 = vpack.c.b16 %v399, %v398
        %v452 = vpack.c.b16 %v401, %v400
        %v453 = vpack.c.b16 %v403, %v402
        %v454 = vpack.c.b16 %v405, %v404
        %v455 = vpack.c.b16 %v407, %v406
        %v456 = vpack.c.b16 %v409, %v408
        %v457 = vpack.c.b16 %v411, %v410
        %v458 = vpack.c.b16 %v413, %v412
        %v459 = vpack.c.b16 %v415, %v414
        %v460 = vpack.c.b16 %v417, %v416
        %v461 = vpack.c.b16 %v419, %v418
        %v462 = vpack.c.b16 %v421, %v420
        %v463 = vpack.c.b16 %v423, %v422
        %v464 = vpack.c.b16 %v425, %v424
        %v465 = vpack.c.b16 %v427, %v426
        %v466 = vpack.c.b16 %v429, %v428
        %v467 = vpack.c.b16 %v431, %v430
        %v468 = vpack.c.b16 %v433, %v432
        %v469 = vpack.c.b16 %v435, %v434
        %v470 = vpack.c.b16 %v437, %v436
        %v471 = vpack.c.b16 %v439, %v438
        %504 = vmatpush.bf16.msra.mxu0 %v447
        %505 = vmatpush.bf16.msra.mxu0 %v446
        %506 = vmatpush.bf16.msra.mxu0 %v445
        %507 = vmatpush.bf16.msra.mxu0 %v444
        %508 = vmatpush.bf16.msra.mxu0 %v443
        %509 = vmatpush.bf16.msra.mxu0 %v442
        %510 = vmatpush.bf16.msra.mxu0 %v441
        %511 = vmatpush.bf16.msra.mxu0 %v440
        %512 = vmatmul.bf16.gmra.mxu0 %v304
        %v513 = vpop.f32.mrf.mxu0
        %v514 = vadd.f32 %v290, %v513
        %v515 = vpop.f32.mrf.mxu0
        %v516 = vadd.f32 %v290, %v515
        %517 = vdwg.mxu0
        %518 = vmatpush.bf16.msra.mxu0 %v455
        %519 = vmatpush.bf16.msra.mxu0 %v454
        %520 = vmatpush.bf16.msra.mxu0 %v453
        %521 = vmatpush.bf16.msra.mxu0 %v452
        %522 = vmatpush.bf16.msra.mxu0 %v451
        %523 = vmatpush.bf16.msra.mxu0 %v450
        %524 = vmatpush.bf16.msra.mxu0 %v449
        %525 = vmatpush.bf16.msra.mxu0 %v448
        %526 = vmatmul.bf16.gmra.mxu0 %v305
        %v527 = vpop.f32.mrf.mxu0
        %v528 = vadd.f32 %v514, %v527
        %v529 = vpop.f32.mrf.mxu0
        %v530 = vadd.f32 %v516, %v529
        %531 = vdwg.mxu0
        %532 = vmatpush.bf16.msra.mxu0 %v463
        %533 = vmatpush.bf16.msra.mxu0 %v462
        %534 = vmatpush.bf16.msra.mxu0 %v461
        %535 = vmatpush.bf16.msra.mxu0 %v460
        %536 = vmatpush.bf16.msra.mxu0 %v459
        %537 = vmatpush.bf16.msra.mxu0 %v458
        %538 = vmatpush.bf16.msra.mxu0 %v457
        %539 = vmatpush.bf16.msra.mxu0 %v456
        %540 = vmatmul.bf16.gmra.mxu0 %v306
        %v541 = vpop.f32.mrf.mxu0
        %v542 = vadd.f32 %v528, %v541
        %v543 = vpop.f32.mrf.mxu0
        %v544 = vadd.f32 %v530, %v543
        %545 = vdwg.mxu0
        %546 = vmatpush.bf16.msra.mxu0 %v471
        %547 = vmatpush.bf16.msra.mxu0 %v470
        %548 = vmatpush.bf16.msra.mxu0 %v469
        %549 = vmatpush.bf16.msra.mxu0 %v468
        %550 = vmatpush.bf16.msra.mxu0 %v467
        %551 = vmatpush.bf16.msra.mxu0 %v466
        %552 = vmatpush.bf16.msra.mxu0 %v465
        %553 = vmatpush.bf16.msra.mxu0 %v464
        %554 = vmatmul.bf16.gmra.mxu0 %v307
        %v555 = vpop.f32.mrf.mxu0
        %v556 = vadd.f32 %v542, %v555
        %v557 = vpop.f32.mrf.mxu0
        %v558 = vadd.f32 %v544, %v557
        %559 = vdwg.mxu0
        %vm560 = vcmask 261120
        %561 = vst.msk [vmem:[%s204] sm:$0xff] %vm560, %v556
        %562 = vst.msk [vmem:[%s204 + $0x8] sm:$0xff] %vm560, %v558
        %s563 = sand.u32 %s117, 1
        %s564 = scalar_lea.sflag [#allocation3], %s563
        %s565 = sand.u32 %s117, 1
        %s566 = smul.addr %s565, 16
        %s567 = scalar_lea.vmem [#allocation2], %s566
        // Predicated region
        $region33: #{tpu_custom_call.1} parent=31 // pred_check
          %p568 = pneg %p127
        $region34: #{tpu_custom_call.1} parent=31 // pred_check_branch
          %570 = sbr.rel (%p568) target = $region36
        $region35: #{tpu_custom_call.1} parent=31 // pred_region
          %s571 = smul.u32 2, %s21
          %573 = vsyncadd %s564, 0
          %s574 = sadd.s32 %s22, %s571
          %s575 = smul.addr %s574, 8
          %s576 = scalar_lea.hbm %s3, %s575
          %s577 = sshll.u32 %s567, 4
          %s578 = int_to_ptr.vmem [resolvable:$true] %s577
          %s579 = sshll.u32 %s576, 4
          %s580 = int_to_ptr.hbm [resolvable:$true] %s579
          %585 = dma.vmem_to_hbm [thread:$0]  %s578, 256, %s580, %s564, 128, 128, 8
        $region36: #{tpu_custom_call.1} parent=31 // pred_fallthru
          _
      $region32: #{tpu_custom_call.1} parent=5 // pred_fallthru
        _
      %p586 = scmp.le.s32.totalorder 2, %s12
      // Predicated region
      $region37: #{tpu_custom_call.1} parent=5 // pred_check
        %p587 = pneg %p586
      $region38: #{tpu_custom_call.1} parent=5 // pred_check_branch
        %589 = sbr.rel (%p587) target = $region40
      $region39: #{tpu_custom_call.1} parent=5 // pred_region
        %s590 = ssub.s32 %s12, 2
        // Predicated region
        $region41: #{tpu_custom_call.1} parent=39 // pred_check
          %p591 = pneg %p133
        $region42: #{tpu_custom_call.1} parent=39 // pred_check_branch
          %593 = sbr.rel (%p591) target = $region44
        $region43: #{tpu_custom_call.1} parent=39 // pred_region
          %s594 = sand.u32 %s118, 1
          %s595 = scalar_lea.sflag [#allocation3], %s594
          %s596 = sand.u32 %s118, 1
          %s597 = smul.addr %s596, 16
          %s598 = scalar_lea.vmem [#allocation2], %s597
          %600 = dma.done %s595, 256
        $region44: #{tpu_custom_call.1} parent=39 // pred_fallthru
          _
      $region40: #{tpu_custom_call.1} parent=5 // pred_fallthru
        _
    $region6: #{tpu_custom_call.1} parent=1 // loop_footer
      %s16 = sadd.s32 1, %s12
    $region7: #{tpu_custom_call.1} parent=1 // loop_footer_branch
      %11 = sbr.rel target = $region3
    $region8: #{tpu_custom_call.1} parent=1 // loop_exit
      _
    %601 = vsyncpa [#allocation3], 1
    %s602 = scalar_lea.sflag [#allocation3], 1
    %603 = vsyncpa %s602, 1

</llo_original>
